<compile_context>
chip_gen: v6e
topology: v6e:2x2x1
jax: 0.10.0
libtpu: 0.0.40
codegen_flags: <defaults>
</compile_context>

<pallas_src>
import jax
import jax.numpy as jnp
from jax.experimental import pallas as pl
from jax.experimental.pallas import tpu as pltpu


def periodic_kernel(x_ref, y_ref):
    # x_ref: (TR, L) rows of the flattened (N*C, L) input tile.
    # y_ref: (TR, L+2) rows of the padded output tile.
    l = x_ref.shape[-1]
    # Interior: single streaming load -> store (no concat materialization).
    y_ref[:, 1:l + 1] = x_ref[...]
    # Wrap columns.
    y_ref[:, 0:1] = x_ref[:, l - 1:l]          # y[:, 0]  = x[:, -1]
    y_ref[:, l + 1:l + 2] = x_ref[:, 0:1]      # y[:, -1] = x[:, 0]


def periodic(x, *, vmem_tile_budget_bytes=8 * 1024 * 1024):
    """Periodic (wrap) pad of +1 column on each side of the last axis."""
    n, c, l = x.shape
    rows = n * c
    x2 = x.reshape(rows, l)

    itemsize = int(jnp.dtype(x.dtype).itemsize)
    # Sublane packing: 8 rows/vreg at 32-bit, 16 at 16-bit, 32 at 8-bit.
    sub = max(8, 32 // max(itemsize, 1))

    # Row-block size: keep double-buffered (in + out) tiles under the budget.
    bytes_per_row_buffered = 2 * (l + (l + 2)) * itemsize
    tr_cap = max(sub, vmem_tile_budget_bytes // max(bytes_per_row_buffered, 1))

    if rows <= sub:
        tr = rows                              # full extent: always legal
    else:
        tr = min(tr_cap, rows)
        tr = max(sub, (tr // sub) * sub)       # multiple of the sublane pack
        # Partial last block (rows % tr != 0) is fine: each output row depends
        # only on its own input row, and Pallas masks OOB writebacks.

    grid = (pl.cdiv(rows, tr),)

    out2 = pl.pallas_call(
        periodic_kernel,
        out_shape=jax.ShapeDtypeStruct((rows, l + 2), x.dtype),
        grid=grid,
        in_specs=[pl.BlockSpec((tr, l), lambda i: (i, 0))],
        out_specs=pl.BlockSpec((tr, l + 2), lambda i: (i, 0)),
        compiler_params=pltpu.CompilerParams(
            dimension_semantics=("parallel",),
            vmem_limit_bytes=32 * 1024 * 1024,
        ),
    )(x2)
    return out2.reshape(n, c, l + 2)


if __name__ == "__main__":
    key = jax.random.PRNGKey(0)
    n, c, l = 2, 4, 16
    x = jax.random.normal(key, (n, c, l), dtype=jnp.float32)

    y = jax.block_until_ready(periodic(x))

    # Reference (plain JAX) check of periodic-pad semantics.
    ref = jnp.concatenate([x[:, :, -1:], x, x[:, :, :1]], axis=-1)
    assert y.shape == (n, c, l + 2), y.shape
    assert y.dtype == x.dtype
    assert jnp.allclose(y, ref), "mismatch vs reference"

    print("KERNEL_OK")
</pallas_src>

<mosaic_0001>
module attributes {stable_mosaic.version = 11 : i64} {
  func.func @periodic_kernel(%arg0: i32, %arg1: memref<8x16xf32, #tpu.memory_space<vmem>>, %arg2: memref<8x18xf32, #tpu.memory_space<vmem>>) attributes {dimension_semantics = [#tpu.dimension_semantics<parallel>], iteration_bounds = array<i64: 1>, scalar_prefetch = 0 : i64, scratch_operands = 0 : i64, tpu.core_type = #tpu.core_type<tc>, window_params = [{transform_indices = @transform_0, window_bounds = array<i64: 8, 16>}, {transform_indices = @transform_1, window_bounds = array<i64: 8, 18>}]} {
    %c0 = arith.constant 0 : index
    %c0_0 = arith.constant 0 : index
    %0 = vector.load %arg1[%c0, %c0_0] : memref<8x16xf32, #tpu.memory_space<vmem>>, vector<8x16xf32>
    %c0_1 = arith.constant 0 : index
    %c1 = arith.constant 1 : index
    %1 = vector.load %arg2[%c0_1, %c1] : memref<8x18xf32, #tpu.memory_space<vmem>>, vector<8x16xf32>
    tpu.vector_store %arg2[%c0_1, %c1], %0 {strides = array<i32>} : memref<8x18xf32, #tpu.memory_space<vmem>>, vector<8x16xf32>,
    %c0_2 = arith.constant 0 : index
    %c15 = arith.constant 15 : index
    %2 = vector.load %arg1[%c0_2, %c15] : memref<8x16xf32, #tpu.memory_space<vmem>>, vector<8x1xf32>
    %c0_3 = arith.constant 0 : index
    %c0_4 = arith.constant 0 : index
    %3 = vector.load %arg2[%c0_3, %c0_4] : memref<8x18xf32, #tpu.memory_space<vmem>>, vector<8x1xf32>
    tpu.vector_store %arg2[%c0_3, %c0_4], %2 {strides = array<i32>} : memref<8x18xf32, #tpu.memory_space<vmem>>, vector<8x1xf32>,
    %c0_5 = arith.constant 0 : index
    %c0_6 = arith.constant 0 : index
    %4 = vector.load %arg1[%c0_5, %c0_6] : memref<8x16xf32, #tpu.memory_space<vmem>>, vector<8x1xf32>
    %c0_7 = arith.constant 0 : index
    %c17 = arith.constant 17 : index
    %5 = vector.load %arg2[%c0_7, %c17] : memref<8x18xf32, #tpu.memory_space<vmem>>, vector<8x1xf32>
    tpu.vector_store %arg2[%c0_7, %c17], %4 {strides = array<i32>} : memref<8x18xf32, #tpu.memory_space<vmem>>, vector<8x1xf32>,
    return
  }
  func.func @transform_0(%arg0: i32) -> (i32, i32) {
    %c0_i32 = arith.constant 0 : i32
    %c0_i32_0 = arith.constant 0 : i32
    return %arg0, %c0_i32 : i32, i32
  }
  func.func @transform_1(%arg0: i32) -> (i32, i32) {
    %c0_i32 = arith.constant 0 : i32
    %c0_i32_0 = arith.constant 0 : i32
    return %arg0, %c0_i32 : i32, i32
  }
}

</mosaic_0001>

<llo_original>
// kernel: tpu_custom_call.1
$region0: #{tpu_custom_call.1}
  #allocation0 [shape = 'u32[]', space=smem, size = 0x4, offset = 0x4, fixed_abs, tag = 'smem constant byte address 0x4 - core index']
  #allocation1 [shape = 'u32[144,128]{1,0:T(1,128)}', space=vmem, size = 0x12000, scoped, tag = 'internal scratch']
  %s0 = inlined_call_operand.hbm [shape: f32[8,16], index: 0, kind: input, shape index: {}]
  %s1 = inlined_call_operand.hbm [shape: f32[8,18], index: 1, kind: output, shape index: {}]
  %s2 = sld [smem:[#allocation0]]
  $region18: #{tpu_custom_call.1} parent=0
    _
  %s4 = ssub.s32 1, %s2
  %s5 = scalar_select 0, %s4, %s2
  $region1: #{tpu_custom_call.1} parent=0
    #allocation2 [shape = 'u8[4096]{0}', space=vmem, size = 0x1000, scoped, tag = 'input window, operand 0, single buffered']
    #allocation3 [shape = 's32[1]{0}', space=sflag, size = 0x4, scoped, tag = 'scoped memory for tpu_custom_call.1']
    #allocation4 [shape = 's32[1]{0}', space=sflag, size = 0x4, scoped, tag = 'scoped memory for tpu_custom_call.1']
    #allocation5 [shape = 'u8[4096]{0}', space=vmem, size = 0x1000, scoped, tag = 'output window, operand 0, single buffered']
    %6 = vsyncpa [#allocation3], 0
    %7 = vsyncpa [#allocation4], 0
    // Predicated region
    $region2: #{tpu_custom_call.1} parent=1 // pred_check
      _
    $region3: #{tpu_custom_call.1} parent=1 // pred_check_branch
      %9 = sbr.rel (0) target = $region5
    $region4: #{tpu_custom_call.1} parent=1 // pred_region
      %s11 = ssub.s32 128, 128
      %12 = vsyncadd [#allocation3], %s11
      %s14 = sshll.u32 [#allocation2], 4
      %s15 = int_to_ptr.vmem [resolvable:$true] %s14
      %17 = dma.hbm_to_vmem [thread:$0]  %s0, 128, %s15, [#allocation3]
    $region5: #{tpu_custom_call.1} parent=1 // pred_fallthru
      _
    // Predicated region
    $region6: #{tpu_custom_call.1} parent=1 // pred_check
      _
    $region7: #{tpu_custom_call.1} parent=1 // pred_check_branch
      %19 = sbr.rel (0) target = $region9
    $region8: #{tpu_custom_call.1} parent=1 // pred_region
      %20 = dma.done [#allocation3], 128
    $region9: #{tpu_custom_call.1} parent=1 // pred_fallthru
      _
    %v21 = vld [vmem:[#allocation2] sm:$0xff]
    %23 = vrot.lane.b32.xlu0 %v21, 1
    %v24 = vpop.permute.xlu0 %23
    %vm26 = vcmask 138248
    %27 = vst.msk [vmem:[#allocation5] sm:$0xff] %vm26, %v24
    %v28 = vld [vmem:[#allocation2] sm:$0xff]
    %30 = vrot.lane.b32.xlu0 %v28, 113
    %v31 = vpop.permute.xlu0 %30
    %vm33 = vcmask 7168
    %34 = vst.msk [vmem:[#allocation5] sm:$0xff] %vm33, %v31
    %v35 = vld [vmem:[#allocation2] sm:$0xff]
    %37 = vrot.lane.b32.xlu0 %v35, 17
    %v38 = vpop.permute.xlu0 %37
    %vm40 = vcmask 146568
    %41 = vst.msk [vmem:[#allocation5] sm:$0xff] %vm40, %v38
    // Predicated region
    $region10: #{tpu_custom_call.1} parent=1 // pred_check
      _
    $region11: #{tpu_custom_call.1} parent=1 // pred_check_branch
      %43 = sbr.rel (0) target = $region13
    $region12: #{tpu_custom_call.1} parent=1 // pred_region
      %s45 = ssub.s32 128, 128
      %46 = vsyncadd [#allocation4], %s45
      %s48 = sshll.u32 [#allocation5], 4
      %s49 = int_to_ptr.vmem [resolvable:$true] %s48
      %51 = dma.vmem_to_hbm [thread:$0]  %s49, 128, %s1, [#allocation4]
    $region13: #{tpu_custom_call.1} parent=1 // pred_fallthru
      _
    // Predicated region
    $region14: #{tpu_custom_call.1} parent=1 // pred_check
      _
    $region15: #{tpu_custom_call.1} parent=1 // pred_check_branch
      %53 = sbr.rel (0) target = $region17
    $region16: #{tpu_custom_call.1} parent=1 // pred_region
      %54 = dma.done [#allocation4], 128
    $region17: #{tpu_custom_call.1} parent=1 // pred_fallthru
      _
    %55 = vsyncpa [#allocation3], 1
    %56 = vsyncpa [#allocation4], 1

</llo_original>
